<compile_context>
chip_gen: v7x
topology: tpu7x:2x2x1
jax: 0.10.0
libtpu: 0.0.40
codegen_flags: <defaults>
</compile_context>

<pallas_src>
import functools

import jax
import jax.numpy as jnp
from jax.experimental import pallas as pl
from jax.experimental.pallas import tpu as pltpu

EPS = 1e-12   # FastLayerNorm default (matches the PyTorch spec)


# ---------------------------------------------------------------------------
# VMEM / tiling helpers (generation-aware).
# ---------------------------------------------------------------------------
def _vmem_capacity_bytes():
    try:
        return int(pltpu.get_tpu_info().vmem_capacity_bytes)
    except Exception:
        return 64 << 20          # conservative fallback: v7x per-TC VMEM


def _resident_footprint(tile_rows, H, xb, mb):
    """VMEM bytes for the weight-resident variant (double-buffered blocks)."""
    return (2 * tile_rows * H * xb       # x block
            + 2 * tile_rows * H * xb     # out block
            + 2 * H * H * mb             # W (buffer pair, fetched once)
            + 8 * H * 4)                 # ln_w / ln_b / bias (negligible)


def _ktiled_footprint(tile_rows, tk, H, xb, mb):
    """VMEM bytes for the K-tiled fallback variant."""
    return (2 * tile_rows * H * xb       # x block
            + 2 * tile_rows * H * xb     # out block
            + 2 * tk * H * mb            # W block
            + tile_rows * H * mb         # LN(x) scratch (bf16)
            + tile_rows * H * 4          # f32 accumulator
            + 8 * H * 4)


def _pick_row_tile(rows, budget, footprint_fn):
    """Largest legal row tile that fits the VMEM budget; prefer an even number
    of >= 2 grid steps so the 'parallel' axis can be split across 2 TCs."""
    cands = [c for c in (1024, 512, 256, 128, 64, 32, 16, 8)
             if c <= rows and rows % c == 0]
    if not cands:
        return rows                              # tiny / odd rows: full tile
    fitting = [c for c in cands if footprint_fn(c) <= budget]
    if not fitting:
        fitting = [min(cands)]                   # smallest legal tile
    for c in fitting:                            # descending
        steps = rows // c
        if steps >= 2 and steps % 2 == 0:
            return c
    for c in fitting:
        if rows // c >= 2:
            return c
    return fitting[0]


def _pick_k_tile(H):
    for cand in (512, 256):                      # MXU is 256-wide on v6e/v7x
        if H % cand == 0:
            return cand
    if H % 128 == 0:
        return 128
    return H


def _dropout_threshold(dropout_rate):
    keep = 1.0 - dropout_rate
    return jnp.uint32(min(int(keep * 4294967296.0), 4294967295))


# ---------------------------------------------------------------------------
# Variant A: W fully resident in VMEM (fetched once).  Grid = (row_tiles,).
# LN -> MXU matmul -> bias -> (dropout) -> residual, all in one grid step.
# ---------------------------------------------------------------------------
def _fused_resident_kernel(x_ref, lnw_ref, lnb_ref, w_ref, b_ref, seed_ref,
                           o_ref, *, dropout_rate, apply_dropout):
    x = x_ref[...].astype(jnp.float32)                      # (TR, H)
    u = jnp.mean(x, axis=-1, keepdims=True)
    xc = x - u
    var = jnp.mean(xc * xc, axis=-1, keepdims=True)         # biased variance
    inv = jax.lax.rsqrt(var + EPS)                          # EUP slot
    lnw = lnw_ref[...].astype(jnp.float32)                  # (1, H)
    lnb = lnb_ref[...].astype(jnp.float32)
    normed = (xc * inv * lnw + lnb).astype(w_ref.dtype)     # bf16 MXU input

    y = jnp.dot(normed, w_ref[...], preferred_element_type=jnp.float32)
    y = y + b_ref[...].astype(jnp.float32)

    if apply_dropout:
        # TODO(synk): mask is kernel-specific; it will not match torch's RNG.
        pltpu.prng_seed(seed_ref[0] + pl.program_id(0))
        bits = pltpu.bitcast(pltpu.prng_random_bits(y.shape), jnp.uint32)
        keep = 1.0 - dropout_rate
        y = jnp.where(bits < _dropout_threshold(dropout_rate),
                      y * (1.0 / keep), jnp.float32(0.0))

    o_ref[...] = (x + y).astype(o_ref.dtype)


# ---------------------------------------------------------------------------
# Variant B (fallback for very large H): K-tiled matmul with f32 accumulator.
# Grid = (row_tiles, k_tiles); reduction axis last ("arbitrary").
# ---------------------------------------------------------------------------
def _fused_ktiled_kernel(x_ref, lnw_ref, lnb_ref, w_ref, b_ref, seed_ref,
                         o_ref, normed_ref, acc_ref,
                         *, num_k, tk, dropout_rate, apply_dropout):
    k = pl.program_id(1)

    # Prologue: LayerNorm of the x row tile, stashed once per row tile.
    @pl.when(k == 0)
    def _():
        x = x_ref[...].astype(jnp.float32)
        u = jnp.mean(x, axis=-1, keepdims=True)
        xc = x - u
        var = jnp.mean(xc * xc, axis=-1, keepdims=True)
        inv = jax.lax.rsqrt(var + EPS)
        lnw = lnw_ref[...].astype(jnp.float32)
        lnb = lnb_ref[...].astype(jnp.float32)
        normed_ref[...] = (xc * inv * lnw + lnb).astype(normed_ref.dtype)

    off = pl.multiple_of(k * tk, tk)                         # lane-aligned
    contrib = jnp.dot(normed_ref[:, pl.ds(off, tk)], w_ref[...],
                      preferred_element_type=jnp.float32)

    # No zero-init: first K step writes dot()+bias, later steps accumulate.
    @pl.when(k == 0)
    def _():
        acc_ref[...] = contrib + b_ref[...].astype(jnp.float32)

    @pl.when(k > 0)
    def _():
        acc_ref[...] += contrib

    # Epilogue: (dropout) + residual, single lane-dense store.
    @pl.when(k == num_k - 1)
    def _():
        y = acc_ref[...]
        if apply_dropout:
            pltpu.prng_seed(seed_ref[0] + pl.program_id(0))
            bits = pltpu.bitcast(pltpu.prng_random_bits(y.shape), jnp.uint32)
            keep = 1.0 - dropout_rate
            y = jnp.where(bits < _dropout_threshold(dropout_rate),
                          y * (1.0 / keep), jnp.float32(0.0))
        o_ref[...] = (x_ref[...].astype(jnp.float32) + y).astype(o_ref.dtype)


# ---------------------------------------------------------------------------
# Wrapper: SublayerConnection.forward with a dense H->H sublayer.
# ---------------------------------------------------------------------------
def sublayer_connection(x, ln_weight, ln_bias, w, b, *,
                        dropout_rate=0.0, seed=0,
                        matmul_dtype=jnp.bfloat16):
    """x: (B, S, H). w: (H, H). Returns x + dropout(LN(x) @ w + b)."""
    B, S, H = x.shape
    rows = B * S
    xb = x.dtype.itemsize
    mb = jnp.dtype(matmul_dtype).itemsize

    # Weight should already live in matmul_dtype (bf16) upstream; casting per
    # call costs an extra H^2-sized HBM pass, so only do it as a fallback.
    w_c = w if w.dtype == jnp.dtype(matmul_dtype) else w.astype(matmul_dtype)

    cap = _vmem_capacity_bytes()
    budget = int(cap * 0.75)                     # headroom for Mosaic scratch

    x2d = x.reshape(rows, H)
    lnw2 = ln_weight.reshape(1, H)
    lnb2 = ln_bias.reshape(1, H)
    b2 = b.reshape(1, H)
    seed_arr = jnp.asarray([seed], dtype=jnp.int32)
    apply_dropout = bool(dropout_rate > 0.0)

    # Can the whole (H,H) weight sit in VMEM next to minimal row tiles?
    w_resident = _resident_footprint(8, H, xb, mb) <= budget

    if w_resident:
        tile_rows = _pick_row_tile(
            rows, budget, lambda tr: _resident_footprint(tr, H, xb, mb))
        fp = _resident_footprint(tile_rows, H, xb, mb)
        vmem_limit = int(min(max(int(fp * 1.25) + (2 << 20), 16 << 20), cap))

        kernel = functools.partial(_fused_resident_kernel,
                                   dropout_rate=float(dropout_rate),
                                   apply_dropout=apply_dropout)
        out2d = pl.pallas_call(
            kernel,
            out_shape=jax.ShapeDtypeStruct((rows, H), x.dtype),
            grid_spec=pltpu.PrefetchScalarGridSpec(
                num_scalar_prefetch=0,
                grid=(rows // tile_rows,),
                in_specs=[
                    pl.BlockSpec((tile_rows, H), lambda i: (i, 0)),   # x
                    pl.BlockSpec((1, H), lambda i: (0, 0)),           # ln w
                    pl.BlockSpec((1, H), lambda i: (0, 0)),           # ln b
                    pl.BlockSpec((H, H), lambda i: (0, 0)),           # W (once)
                    pl.BlockSpec((1, H), lambda i: (0, 0)),           # bias
                    pl.BlockSpec(memory_space=pltpu.MemorySpace.SMEM),  # seed
                ],
                out_specs=pl.BlockSpec((tile_rows, H), lambda i: (i, 0)),
            ),
            compiler_params=pltpu.CompilerParams(
                dimension_semantics=("parallel",),
                vmem_limit_bytes=vmem_limit,
            ),
        )(x2d, lnw2, lnb2, w_c, b2, seed_arr)
    else:
        tk = _pick_k_tile(H)
        num_k = H // tk
        tile_rows = _pick_row_tile(
            rows, budget, lambda tr: _ktiled_footprint(tr, tk, H, xb, mb))
        fp = _ktiled_footprint(tile_rows, tk, H, xb, mb)
        vmem_limit = int(min(max(int(fp * 1.25) + (2 << 20), 16 << 20), cap))

        kernel = functools.partial(_fused_ktiled_kernel,
                                   num_k=num_k, tk=tk,
                                   dropout_rate=float(dropout_rate),
                                   apply_dropout=apply_dropout)
        out2d = pl.pallas_call(
            kernel,
            out_shape=jax.ShapeDtypeStruct((rows, H), x.dtype),
            grid_spec=pltpu.PrefetchScalarGridSpec(
                num_scalar_prefetch=0,
                grid=(rows // tile_rows, num_k),        # reduction axis last
                in_specs=[
                    pl.BlockSpec((tile_rows, H), lambda i, k: (i, 0)),  # x
                    pl.BlockSpec((1, H), lambda i, k: (0, 0)),          # ln w
                    pl.BlockSpec((1, H), lambda i, k: (0, 0)),          # ln b
                    pl.BlockSpec((tk, H), lambda i, k: (k, 0)),         # W
                    pl.BlockSpec((1, H), lambda i, k: (0, 0)),          # bias
                    pl.BlockSpec(memory_space=pltpu.MemorySpace.SMEM),  # seed
                ],
                out_specs=pl.BlockSpec((tile_rows, H), lambda i, k: (i, 0)),
                scratch_shapes=[
                    pltpu.VMEM((tile_rows, H), matmul_dtype),  # LN(x) tile
                    pltpu.VMEM((tile_rows, H), jnp.float32),   # f32 acc
                ],
            ),
            compiler_params=pltpu.CompilerParams(
                dimension_semantics=("parallel", "arbitrary"),
                vmem_limit_bytes=vmem_limit,
            ),
        )(x2d, lnw2, lnb2, w_c, b2, seed_arr)

    return out2d.reshape(B, S, H)


# ---------------------------------------------------------------------------
# Pure-JAX reference (same bf16 matmul inputs / f32 accumulation as kernel).
# ---------------------------------------------------------------------------
def ref_sublayer_connection(x, ln_weight, ln_bias, w, b, *,
                            matmul_dtype=jnp.bfloat16):
    u = jnp.mean(x, axis=-1, keepdims=True)
    s = jnp.mean((x - u) ** 2, axis=-1, keepdims=True)
    normed = ln_weight * ((x - u) * jax.lax.rsqrt(s + EPS)) + ln_bias
    B, S, H = x.shape
    n2 = normed.reshape(B * S, H).astype(matmul_dtype)
    y = jnp.dot(n2, w.astype(matmul_dtype),
                preferred_element_type=jnp.float32) + b.astype(jnp.float32)
    return x + y.reshape(B, S, H)


if __name__ == "__main__":
    key = jax.random.PRNGKey(0)
    # H a multiple of 128 so stores are lane-dense (unmasked vst).
    B, S, H = 2, 8, 128
    kx, kw, kb, kg, kh = jax.random.split(key, 5)

    x = jax.random.normal(kx, (B, S, H), dtype=jnp.float32)

    # FastLayerNorm parameters (perturbed to exercise the affine path).
    ln_weight = jnp.ones((H,), jnp.float32) + 0.1 * jax.random.normal(kg, (H,))
    ln_bias = 0.1 * jax.random.normal(kh, (H,), dtype=jnp.float32)

    # Dense H -> H sublayer weights, stored in bf16 upstream (cast hoisted
    # out of the per-call path, per perf review).
    w_lin = (jax.random.normal(kw, (H, H), dtype=jnp.float32) * 0.02
             ).astype(jnp.bfloat16)
    b_lin = jax.random.normal(kb, (H,), dtype=jnp.float32) * 0.02

    # Eval mode: dropout_rate = 0 -> identity (matches nn.Dropout.eval()).
    out = sublayer_connection(x, ln_weight, ln_bias, w_lin, b_lin,
                              dropout_rate=0.0)
    out = jax.block_until_ready(out)

    ref = ref_sublayer_connection(x, ln_weight, ln_bias, w_lin, b_lin)
    assert out.shape == (B, S, H)
    err = float(jnp.max(jnp.abs(out - ref)))
    assert jnp.allclose(out, ref, atol=1e-3, rtol=1e-3), f"max abs err {err}"

    print("KERNEL_OK")
</pallas_src>

<mosaic_0001>
module attributes {stable_mosaic.version = 11 : i64} {
  func.func @_fused_resident_kernel(%arg0: i32, %arg1: memref<8x128xf32, #tpu.memory_space<vmem>>, %arg2: memref<1x128xf32, #tpu.memory_space<vmem>>, %arg3: memref<1x128xf32, #tpu.memory_space<vmem>>, %arg4: memref<128x128xbf16, #tpu.memory_space<vmem>>, %arg5: memref<1x128xf32, #tpu.memory_space<vmem>>, %arg6: memref<1xi32, #tpu.memory_space<smem>>, %arg7: memref<8x128xf32, #tpu.memory_space<vmem>>) attributes {dimension_semantics = [#tpu.dimension_semantics<parallel>], iteration_bounds = array<i64: 2>, scalar_prefetch = 0 : i64, scratch_operands = 0 : i64, tpu.core_type = #tpu.core_type<tc>, window_params = [{transform_indices = @transform_0, window_bounds = array<i64: 8, 128>}, {pipeline_mode = #tpu.pipeline_mode<synchronous>, transform_indices = @transform_1, window_bounds = array<i64: 1, 128>}, {pipeline_mode = #tpu.pipeline_mode<synchronous>, transform_indices = @transform_2, window_bounds = array<i64: 1, 128>}, {pipeline_mode = #tpu.pipeline_mode<synchronous>, transform_indices = @transform_3, window_bounds = array<i64: 128, 128>}, {pipeline_mode = #tpu.pipeline_mode<synchronous>, transform_indices = @transform_4, window_bounds = array<i64: 1, 128>}, {transform_indices = @transform_5, window_bounds = array<i64: 1>}, {transform_indices = @transform_6, window_bounds = array<i64: 8, 128>}]} {
    %c0 = arith.constant 0 : index
    %c0_0 = arith.constant 0 : index
    %0 = vector.load %arg1[%c0, %c0_0] : memref<8x128xf32, #tpu.memory_space<vmem>>, vector<8x128xf32>
    %cst = arith.constant dense<0.000000e+00> : vector<8xf32>
    %1 = vector.multi_reduction <add>, %0, %cst [1] : vector<8x128xf32> to vector<8xf32>
    %2 = vector.shape_cast %1 : vector<8xf32> to vector<8x1xf32>
    %cst_1 = arith.constant 1.280000e+02 : f32
    %3 = vector.broadcast %cst_1 : f32 to vector<8x1xf32>
    %4 = arith.divf %2, %3 : vector<8x1xf32>
    %5 = vector.broadcast %4 : vector<8x1xf32> to vector<8x128xf32>
    %6 = arith.subf %0, %5 : vector<8x128xf32>
    %7 = arith.mulf %6, %6 : vector<8x128xf32>
    %cst_2 = arith.constant dense<0.000000e+00> : vector<8xf32>
    %8 = vector.multi_reduction <add>, %7, %cst_2 [1] : vector<8x128xf32> to vector<8xf32>
    %9 = vector.shape_cast %8 : vector<8xf32> to vector<8x1xf32>
    %cst_3 = arith.constant 1.280000e+02 : f32
    %10 = vector.broadcast %cst_3 : f32 to vector<8x1xf32>
    %11 = arith.divf %9, %10 : vector<8x1xf32>
    %cst_4 = arith.constant 9.99999996E-13 : f32
    %12 = vector.broadcast %cst_4 : f32 to vector<8x1xf32>
    %13 = arith.addf %11, %12 : vector<8x1xf32>
    %14 = math.rsqrt %13 : vector<8x1xf32>
    %c0_5 = arith.constant 0 : index
    %c0_6 = arith.constant 0 : index
    %15 = vector.load %arg2[%c0_5, %c0_6] : memref<1x128xf32, #tpu.memory_space<vmem>>, vector<1x128xf32>
    %c0_7 = arith.constant 0 : index
    %c0_8 = arith.constant 0 : index
    %16 = vector.load %arg3[%c0_7, %c0_8] : memref<1x128xf32, #tpu.memory_space<vmem>>, vector<1x128xf32>
    %17 = vector.broadcast %14 : vector<8x1xf32> to vector<8x128xf32>
    %18 = arith.mulf %6, %17 : vector<8x128xf32>
    %19 = vector.broadcast %15 : vector<1x128xf32> to vector<8x128xf32>
    %20 = arith.mulf %18, %19 : vector<8x128xf32>
    %21 = vector.broadcast %16 : vector<1x128xf32> to vector<8x128xf32>
    %22 = arith.addf %20, %21 : vector<8x128xf32>
    %23 = arith.truncf %22 : vector<8x128xf32> to vector<8x128xbf16>
    %c0_9 = arith.constant 0 : index
    %c0_10 = arith.constant 0 : index
    %24 = vector.load %arg4[%c0_9, %c0_10] : memref<128x128xbf16, #tpu.memory_space<vmem>>, vector<128x128xbf16>
    %cst_11 = arith.constant dense<0.000000e+00> : vector<8x128xf32>
    %25 = tpu.matmul %23, %24, %cst_11 {dimension_numbers = #tpu.dot_dimension_numbers<[1], [0], [0], [1], [0, 0, 1, 1], [], []>} : vector<8x128xbf16>, vector<128x128xbf16>, vector<8x128xf32> -> vector<8x128xf32>
    %c0_12 = arith.constant 0 : index
    %c0_13 = arith.constant 0 : index
    %26 = vector.load %arg5[%c0_12, %c0_13] : memref<1x128xf32, #tpu.memory_space<vmem>>, vector<1x128xf32>
    %27 = vector.broadcast %26 : vector<1x128xf32> to vector<8x128xf32>
    %28 = arith.addf %25, %27 : vector<8x128xf32>
    %29 = arith.addf %0, %28 : vector<8x128xf32>
    %c0_14 = arith.constant 0 : index
    %c0_15 = arith.constant 0 : index
    %30 = vector.load %arg7[%c0_14, %c0_15] : memref<8x128xf32, #tpu.memory_space<vmem>>, vector<8x128xf32>
    tpu.vector_store %arg7[%c0_14, %c0_15], %29 {strides = array<i32>} : memref<8x128xf32, #tpu.memory_space<vmem>>, vector<8x128xf32>,
    return
  }
  func.func @transform_0(%arg0: i32) -> (i32, i32) {
    %c0_i32 = arith.constant 0 : i32
    %c0_i32_0 = arith.constant 0 : i32
    return %arg0, %c0_i32 : i32, i32
  }
  func.func @transform_1(%arg0: i32) -> (i32, i32) {
    %c0_i32 = arith.constant 0 : i32
    %c0_i32_0 = arith.constant 0 : i32
    %c0_i32_1 = arith.constant 0 : i32
    return %c0_i32, %c0_i32_0 : i32, i32
  }
  func.func @transform_2(%arg0: i32) -> (i32, i32) {
    %c0_i32 = arith.constant 0 : i32
    %c0_i32_0 = arith.constant 0 : i32
    %c0_i32_1 = arith.constant 0 : i32
    return %c0_i32, %c0_i32_0 : i32, i32
  }
  func.func @transform_3(%arg0: i32) -> (i32, i32) {
    %c0_i32 = arith.constant 0 : i32
    %c0_i32_0 = arith.constant 0 : i32
    %c0_i32_1 = arith.constant 0 : i32
    return %c0_i32, %c0_i32_0 : i32, i32
  }
  func.func @transform_4(%arg0: i32) -> (i32, i32) {
    %c0_i32 = arith.constant 0 : i32
    %c0_i32_0 = arith.constant 0 : i32
    %c0_i32_1 = arith.constant 0 : i32
    return %c0_i32, %c0_i32_0 : i32, i32
  }
  func.func @transform_5(%arg0: i32) -> i32 {
    %c0_i32 = arith.constant 0 : i32
    %c0_i32_0 = arith.constant 0 : i32
    return %c0_i32 : i32
  }
  func.func @transform_6(%arg0: i32) -> (i32, i32) {
    %c0_i32 = arith.constant 0 : i32
    %c0_i32_0 = arith.constant 0 : i32
    return %arg0, %c0_i32 : i32, i32
  }
}

</mosaic_0001>

<llo_original>
// kernel: tpu_custom_call.1
$region0: #{tpu_custom_call.1}
  #allocation0 [shape = 'u32[]', space=smem, size = 0x4, offset = 0x4, fixed_abs, tag = 'smem constant byte address 0x4 - core index']
  #allocation1 [shape = 'u32[144,128]{1,0:T(1,128)}', space=vmem, size = 0x12000, scoped, tag = 'internal scratch']
  #allocation2 [shape = 's32[1]{0:T(128)S(6)}', space=smem, size = 0x200, scoped, tag = 'scoped memory for tpu_custom_call.1']
  %s0 = inlined_call_operand.hbm [shape: f32[16,128], index: 0, kind: input, shape index: {}]
  %s1 = inlined_call_operand.vmem [shape: f32[1,128], index: 1, kind: input, shape index: {}]
  %s2 = inlined_call_operand.vmem [shape: f32[1,128], index: 2, kind: input, shape index: {}]
  %s3 = inlined_call_operand.hbm [shape: bf16[128,128], index: 3, kind: input, shape index: {}]
  %s4 = inlined_call_operand.vmem [shape: f32[1,128], index: 4, kind: input, shape index: {}]
  %s5 = inlined_call_operand.<no memory space> [shape: s32[1], index: 5, kind: input, shape index: {}]
  %s6 = inlined_call_operand.hbm [shape: f32[16,128], index: 6, kind: output, shape index: {}]
  %s7 = sld [smem:[#allocation0]]
  $region65: #{tpu_custom_call.1} parent=0
    _
  %s9 = ssub.s32 1, %s7
  %s10 = scalar_select 0, %s9, %s7
  %11 = sst [smem:[#allocation2]] %s5
  $region1: #{tpu_custom_call.1} parent=0
    #allocation3 [shape = 'u8[8192]{0}', space=vmem, size = 0x2000, scoped, tag = 'input window, operand 0']
    #allocation4 [shape = 's32[2]{0}', space=sflag, size = 0x8, scoped, tag = 'scoped memory for tpu_custom_call.1']
    #allocation5 [shape = 's32[2]{0}', space=sflag, size = 0x8, scoped, tag = 'scoped memory for tpu_custom_call.1']
    #allocation6 [shape = 'u8[32768]{0}', space=vmem, size = 0x8000, scoped, tag = 'input window, operand 3, single buffered']
    #allocation7 [shape = 's32[1]{0}', space=sflag, size = 0x4, scoped, tag = 'scoped memory for tpu_custom_call.1']
    #allocation8 [shape = 'u8[8192]{0}', space=vmem, size = 0x2000, scoped, tag = 'output window, operand 0']
    %12 = vsyncpa [#allocation4], 0
    %s13 = scalar_lea.sflag [#allocation4], 1
    %14 = vsyncpa %s13, 0
    %15 = vsyncpa [#allocation7], 0
    %16 = vsyncpa [#allocation5], 0
    %s17 = scalar_lea.sflag [#allocation5], 1
    %18 = vsyncpa %s17, 0
    loop: start=0, step=1, limit=4
    $region2: #{tpu_custom_call.1} parent=1 // loop_pre_header
      _
    $region3: #{tpu_custom_call.1} parent=1 // loop_header
      %s20 = sphi 0, %s24
      %p21 = scmp.ge.s32.totalorder %s20, 4
      %s30 = sphi 0, %s32
      %s33 = sphi 0, %s30
      %s34 = sphi 0, %s33
      %s50 = sphi 0, %s34
      %s54 = sphi 0, %s54
      %s56 = sphi 0, %s54
      %s57 = sphi 0, %s56
      %s71 = sphi 0, %s57
      %s75 = sphi 0, %s75
      %s77 = sphi 0, %s75
      %s78 = sphi 0, %s77
      %s92 = sphi 0, %s78
      %s96 = sphi 0, %s96
      %s98 = sphi 0, %s96
      %s99 = sphi 0, %s98
      %s113 = sphi 0, %s99
      %s117 = sphi 0, %s117
      %s119 = sphi 0, %s117
      %s120 = sphi 0, %s119
      %s134 = sphi 0, %s120
      %s138 = sphi 0, %s138
      %s140 = sphi 0, %s138
      %s141 = sphi 0, %s140
      %s155 = sphi 0, %s141
      %s161 = sphi 0, %s163
      %s164 = sphi 0, %s161
      %s165 = sphi 0, %s164
      %s181 = sphi 0, %s165
    $region4: #{tpu_custom_call.1} parent=1 // loop_header_branch
      %23 = sbr.rel (%p21) target = $region8
    $region5: #{tpu_custom_call.1} parent=1 // loop_body
      %s25 = ssub.s32 %s20, 1
      %s26 = ssub.s32 %s20, 2
      %s27 = sadd.s32 %s20, 1
      %s28 = ssub.s32 %s20, %s27
      %p29 = scmp.eq.s32.totalorder %s28, 0
      %s31 = sadd.s32 %s30, 1
      %s32 = scalar_select %p29, %s30, %s31
      %p35 = pneg %p29
      %p36 = scmp.eq.s32.totalorder %s20, 1
      %p37 = por %p35, %p36
      %p38 = scmp.ne.s32.totalorder %s30, %s33
      %p39 = scmp.eq.s32.totalorder %s20, 0
      %p40 = por %p38, %p39
      %p41 = scmp.ne.s32.totalorder %s30, %s33
      %p42 = scmp.eq.s32.totalorder %s25, 1
      %p43 = por %p41, %p42
      %p44 = scmp.ne.s32.totalorder %s33, %s34
      %p45 = scmp.eq.s32.totalorder %s25, 0
      %p46 = por %p44, %p45
      %p47 = scmp.ne.s32.totalorder %s33, %s34
      %p48 = scmp.eq.s32.totalorder %s26, 1
      %p49 = por %p47, %p48
      %p51 = scmp.ne.s32.totalorder %s34, %s50
      %p52 = scmp.eq.s32.totalorder %s26, 0
      %p53 = por %p51, %p52
      %s55 = sadd.s32 %s54, 1
      %p58 = scmp.eq.s32.totalorder %s20, 1
      %p59 = scmp.ne.s32.totalorder %s54, %s56
      %p60 = scmp.eq.s32.totalorder %s20, 0
      %p61 = por %p59, %p60
      %p62 = scmp.ne.s32.totalorder %s54, %s56
      %p63 = scmp.eq.s32.totalorder %s25, 1
      %p64 = por %p62, %p63
      %p65 = scmp.ne.s32.totalorder %s56, %s57
      %p66 = scmp.eq.s32.totalorder %s25, 0
      %p67 = por %p65, %p66
      %p68 = scmp.ne.s32.totalorder %s56, %s57
      %p69 = scmp.eq.s32.totalorder %s26, 1
      %p70 = por %p68, %p69
      %p72 = scmp.ne.s32.totalorder %s57, %s71
      %p73 = scmp.eq.s32.totalorder %s26, 0
      %p74 = por %p72, %p73
      %s76 = sadd.s32 %s75, 1
      %p79 = scmp.eq.s32.totalorder %s20, 1
      %p80 = scmp.ne.s32.totalorder %s75, %s77
      %p81 = scmp.eq.s32.totalorder %s20, 0
      %p82 = por %p80, %p81
      %p83 = scmp.ne.s32.totalorder %s75, %s77
      %p84 = scmp.eq.s32.totalorder %s25, 1
      %p85 = por %p83, %p84
      %p86 = scmp.ne.s32.totalorder %s77, %s78
      %p87 = scmp.eq.s32.totalorder %s25, 0
      %p88 = por %p86, %p87
      %p89 = scmp.ne.s32.totalorder %s77, %s78
      %p90 = scmp.eq.s32.totalorder %s26, 1
      %p91 = por %p89, %p90
      %p93 = scmp.ne.s32.totalorder %s78, %s92
      %p94 = scmp.eq.s32.totalorder %s26, 0
      %p95 = por %p93, %p94
      %s97 = sadd.s32 %s96, 1
      %p100 = scmp.eq.s32.totalorder %s20, 1
      %p101 = scmp.ne.s32.totalorder %s96, %s98
      %p102 = scmp.eq.s32.totalorder %s20, 0
      %p103 = por %p101, %p102
      %p104 = scmp.ne.s32.totalorder %s96, %s98
      %p105 = scmp.eq.s32.totalorder %s25, 1
      %p106 = por %p104, %p105
      %p107 = scmp.ne.s32.totalorder %s98, %s99
      %p108 = scmp.eq.s32.totalorder %s25, 0
      %p109 = por %p107, %p108
      %p110 = scmp.ne.s32.totalorder %s98, %s99
      %p111 = scmp.eq.s32.totalorder %s26, 1
      %p112 = por %p110, %p111
      %p114 = scmp.ne.s32.totalorder %s99, %s113
      %p115 = scmp.eq.s32.totalorder %s26, 0
      %p116 = por %p114, %p115
      %s118 = sadd.s32 %s117, 1
      %p121 = scmp.eq.s32.totalorder %s20, 1
      %p122 = scmp.ne.s32.totalorder %s117, %s119
      %p123 = scmp.eq.s32.totalorder %s20, 0
      %p124 = por %p122, %p123
      %p125 = scmp.ne.s32.totalorder %s117, %s119
      %p126 = scmp.eq.s32.totalorder %s25, 1
      %p127 = por %p125, %p126
      %p128 = scmp.ne.s32.totalorder %s119, %s120
      %p129 = scmp.eq.s32.totalorder %s25, 0
      %p130 = por %p128, %p129
      %p131 = scmp.ne.s32.totalorder %s119, %s120
      %p132 = scmp.eq.s32.totalorder %s26, 1
      %p133 = por %p131, %p132
      %p135 = scmp.ne.s32.totalorder %s120, %s134
      %p136 = scmp.eq.s32.totalorder %s26, 0
      %p137 = por %p135, %p136
      %s139 = sadd.s32 %s138, 1
      %p142 = scmp.eq.s32.totalorder %s20, 1
      %p143 = scmp.ne.s32.totalorder %s138, %s140
      %p144 = scmp.eq.s32.totalorder %s20, 0
      %p145 = por %p143, %p144
      %p146 = scmp.ne.s32.totalorder %s138, %s140
      %p147 = scmp.eq.s32.totalorder %s25, 1
      %p148 = por %p146, %p147
      %p149 = scmp.ne.s32.totalorder %s140, %s141
      %p150 = scmp.eq.s32.totalorder %s25, 0
      %p151 = por %p149, %p150
      %p152 = scmp.ne.s32.totalorder %s140, %s141
      %p153 = scmp.eq.s32.totalorder %s26, 1
      %p154 = por %p152, %p153
      %p156 = scmp.ne.s32.totalorder %s141, %s155
      %p157 = scmp.eq.s32.totalorder %s26, 0
      %p158 = por %p156, %p157
      %s159 = ssub.s32 %s20, %s27
      %p160 = scmp.eq.s32.totalorder %s159, 0
      %s162 = sadd.s32 %s161, 1
      %s163 = scalar_select %p160, %s161, %s162
      %p166 = pneg %p160
      %p167 = scmp.eq.s32.totalorder %s20, 1
      %p168 = por %p166, %p167
      %p169 = scmp.ne.s32.totalorder %s161, %s164
      %p170 = scmp.eq.s32.totalorder %s20, 0
      %p171 = por %p169, %p170
      %p172 = scmp.ne.s32.totalorder %s161, %s164
      %p173 = scmp.eq.s32.totalorder %s25, 1
      %p174 = por %p172, %p173
      %p175 = scmp.ne.s32.totalorder %s164, %s165
      %p176 = scmp.eq.s32.totalorder %s25, 0
      %p177 = por %p175, %p176
      %p178 = scmp.ne.s32.totalorder %s164, %s165
      %p179 = scmp.eq.s32.totalorder %s26, 1
      %p180 = por %p178, %p179
      %p182 = scmp.ne.s32.totalorder %s165, %s181
      %p183 = scmp.eq.s32.totalorder %s26, 0
      %p184 = por %p182, %p183
      %p185 = scmp.le.s32.totalorder 1, %s20
      %p186 = scmp.lt.s32.totalorder %s20, 3
      %p187 = pnand %p185, %p186
      %p188 = pneg %p187
      // Predicated region
      $region9: #{tpu_custom_call.1} parent=5 // pred_check
        _
      $region10: #{tpu_custom_call.1} parent=5 // pred_check_branch
        %190 = sbr.rel (%p187) target = $region12
      $region11: #{tpu_custom_call.1} parent=5 // pred_region
        %s191 = ssub.s32 %s20, 1
        // Predicated region
        $region13: #{tpu_custom_call.1} parent=11 // pred_check
          %p192 = pneg %p67
        $region14: #{tpu_custom_call.1} parent=11 // pred_check_branch
          %194 = sbr.rel (%p192) target = $region16
        $region15: #{tpu_custom_call.1} parent=11 // pred_region
          _
        $region16: #{tpu_custom_call.1} parent=11 // pred_fallthru
          _
        // Predicated region
        $region17: #{tpu_custom_call.1} parent=11 // pred_check
          %p195 = pneg %p88
        $region18: #{tpu_custom_call.1} parent=11 // pred_check_branch
          %197 = sbr.rel (%p195) target = $region20
        $region19: #{tpu_custom_call.1} parent=11 // pred_region
          _
        $region20: #{tpu_custom_call.1} parent=11 // pred_fallthru
          _
        // Predicated region
        $region21: #{tpu_custom_call.1} parent=11 // pred_check
          %p198 = pneg %p109
        $region22: #{tpu_custom_call.1} parent=11 // pred_check_branch
          %200 = sbr.rel (%p198) target = $region24
        $region23: #{tpu_custom_call.1} parent=11 // pred_region
          %s202 = ssub.s32 1024, 1024
          %203 = vsyncadd [#allocation7], %s202
          %s204 = sshll.u32 [#allocation6], 4
          %s205 = int_to_ptr.vmem [resolvable:$true] %s204
          %210 = dma.hbm_to_vmem [thread:$0]  %s3, 1024, %s205, [#allocation7], 64, 64, 4
        $region24: #{tpu_custom_call.1} parent=11 // pred_fallthru
          _
        // Predicated region
        $region25: #{tpu_custom_call.1} parent=11 // pred_check
          %p211 = pneg %p130
        $region26: #{tpu_custom_call.1} parent=11 // pred_check_branch
          %213 = sbr.rel (%p211) target = $region28
        $region27: #{tpu_custom_call.1} parent=11 // pred_region
          _
        $region28: #{tpu_custom_call.1} parent=11 // pred_fallthru
          _
        // Predicated region
        $region29: #{tpu_custom_call.1} parent=11 // pred_check
          %p214 = pneg %p151
        $region30: #{tpu_custom_call.1} parent=11 // pred_check_branch
          %216 = sbr.rel (%p214) target = $region32
        $region31: #{tpu_custom_call.1} parent=11 // pred_region
          _
        $region32: #{tpu_custom_call.1} parent=11 // pred_fallthru
          _
      $region12: #{tpu_custom_call.1} parent=5 // pred_fallthru
        _
      %p217 = scmp.lt.s32.totalorder %s20, 2
      // Predicated region
      $region33: #{tpu_custom_call.1} parent=5 // pred_check
        %p218 = pneg %p217
      $region34: #{tpu_custom_call.1} parent=5 // pred_check_branch
        %220 = sbr.rel (%p218) target = $region36
      $region35: #{tpu_custom_call.1} parent=5 // pred_region
        // Predicated region
        $region37: #{tpu_custom_call.1} parent=35 // pred_check
          %p221 = pneg %p40
        $region38: #{tpu_custom_call.1} parent=35 // pred_check_branch
          %223 = sbr.rel (%p221) target = $region40
        $region39: #{tpu_custom_call.1} parent=35 // pred_region
          %s224 = sand.u32 %s30, 1
          %s225 = scalar_lea.sflag [#allocation4], %s224
          %s226 = sand.u32 %s30, 1
          %s227 = smul.addr %s226, 8
          %s228 = scalar_lea.vmem [#allocation3], %s227
          %s230 = ssub.s32 128, 128
          %231 = vsyncadd %s225, %s230
          %s232 = smul.addr %s20, 128
          %s233 = scalar_lea.hbm %s0, %s232
          %s235 = sshll.u32 %s228, 4
          %s236 = int_to_ptr.vmem [resolvable:$true] %s235
          %238 = dma.hbm_to_vmem [thread:$0]  %s233, 128, %s236, %s225
        $region40: #{tpu_custom_call.1} parent=35 // pred_fallthru
          _
      $region36: #{tpu_custom_call.1} parent=5 // pred_fallthru
        _
      %p239 = scmp.le.s32.totalorder 1, %s20
      %p240 = scmp.lt.s32.totalorder %s20, 3
      %p241 = pnand %p239, %p240
      %p242 = pneg %p241
      // Predicated region
      $region41: #{tpu_custom_call.1} parent=5 // pred_check
        _
      $region42: #{tpu_custom_call.1} parent=5 // pred_check_branch
        %244 = sbr.rel (%p241) target = $region44
      $region43: #{tpu_custom_call.1} parent=5 // pred_region
        %s245 = ssub.s32 %s20, 1
        %s246 = sand.u32 %s33, 1
        %s247 = scalar_lea.sflag [#allocation4], %s246
        %s248 = sand.u32 %s33, 1
        %s249 = smul.addr %s248, 8
        %s250 = scalar_lea.vmem [#allocation3], %s249
        // Predicated region
        $region45: #{tpu_custom_call.1} parent=43 // pred_check
          %p251 = pneg %p46
        $region46: #{tpu_custom_call.1} parent=43 // pred_check_branch
          %253 = sbr.rel (%p251) target = $region48
        $region47: #{tpu_custom_call.1} parent=43 // pred_region
          %254 = dma.done %s247, 128
        $region48: #{tpu_custom_call.1} parent=43 // pred_fallthru
          _
        // Predicated region
        $region49: #{tpu_custom_call.1} parent=43 // pred_check
          %p255 = pneg %p109
        $region50: #{tpu_custom_call.1} parent=43 // pred_check_branch
          %257 = sbr.rel (%p255) target = $region52
        $region51: #{tpu_custom_call.1} parent=43 // pred_region
          %258 = dma.done [#allocation7], 1024
        $region52: #{tpu_custom_call.1} parent=43 // pred_fallthru
          _
        %s259 = sand.u32 %s33, 1
        %s260 = scalar_lea.sflag [#allocation4], %s259
        %s261 = sand.u32 %s33, 1
        %s262 = smul.addr %s261, 8
        %s263 = scalar_lea.vmem [#allocation3], %s262
        %p264 = pneg %p46
        %p265 = pneg %p43
        %p266 = pneg %p67
        %p267 = pneg %p64
        %p268 = pneg %p88
        %p269 = pneg %p85
        %p270 = pneg %p109
        %p271 = pneg %p106
        %p272 = pneg %p130
        %p273 = pneg %p127
        %p274 = pneg %p151
        %p275 = pneg %p148
        %p276 = pneg %p177
        %p277 = pneg %p174
        %s278 = sand.u32 %s164, 1
        %s279 = scalar_lea.sflag [#allocation5], %s278
        %s280 = sand.u32 %s164, 1
        %s281 = smul.addr %s280, 8
        %s282 = scalar_lea.vmem [#allocation8], %s281
        %v284 = vld [vmem:[%s250] sm:$0xff]
        %285 = vadd.xlane.f32.xlu0 %v284
        %v286 = vpop.xlane.xlu0 %285
        %v287 = vrcp.pop 128.0
        %v288 = vmul.f32 %v286, %v287
        %v289 = vsub.f32 %v284, %v288
        %v290 = vmul.f32 %v289, %v289
        %291 = vadd.xlane.f32.xlu0 %v290
        %v292 = vpop.xlane.xlu0 %291
        %v293 = vmul.f32 %v292, %v287
        %v294 = vadd.f32 %v293, 1e-12
        %v295 = vrsqrt.pop %v294
        %v296 = vld [vmem:[%s1] sm:$0x1]
        %v297 = vld [vmem:[%s2] sm:$0x1]
        %v298 = vmul.f32 %v289, %v295
        %v300 = vlaneseq
        %v301 = vshrl.u32 %v300, 7
        %v302 = vsub.s32 0, %v301
        %v303 = vrot.slane %v296, %v302
        %v305 = vmul.f32 %v298, %v303
        %v307 = vlaneseq
        %v308 = vshrl.u32 %v307, 7
        %v309 = vsub.s32 0, %v308
        %v310 = vrot.slane %v297, %v309
        %v312 = vadd.f32 %v305, %v310
        %v313 = vpack.c.bf16 %v312, %v312
        %v314 = vld [vmem:[#allocation6] sm:$0xf]
        %v315 = vld [vmem:[#allocation6 + $0x4] sm:$0xf]
        %v316 = vld [vmem:[#allocation6 + $0x8] sm:$0xf]
        %v317 = vld [vmem:[#allocation6 + $0xc] sm:$0xf]
        %v318 = vld [vmem:[#allocation6 + $0x10] sm:$0xf]
        %v319 = vld [vmem:[#allocation6 + $0x14] sm:$0xf]
        %v320 = vld [vmem:[#allocation6 + $0x18] sm:$0xf]
        %v321 = vld [vmem:[#allocation6 + $0x1c] sm:$0xf]
        %v322 = vld [vmem:[#allocation6 + $0x20] sm:$0xf]
        %v323 = vld [vmem:[#allocation6 + $0x24] sm:$0xf]
        %v324 = vld [vmem:[#allocation6 + $0x28] sm:$0xf]
        %v325 = vld [vmem:[#allocation6 + $0x2c] sm:$0xf]
        %v326 = vld [vmem:[#allocation6 + $0x30] sm:$0xf]
        %v327 = vld [vmem:[#allocation6 + $0x34] sm:$0xf]
        %v328 = vld [vmem:[#allocation6 + $0x38] sm:$0xf]
        %v329 = vld [vmem:[#allocation6 + $0x3c] sm:$0xf]
        %v330 = vld [vmem:[%s4] sm:$0x1]
        %v332 = vlaneseq
        %v333 = vshrl.u32 %v332, 7
        %v334 = vsub.s32 0, %v333
        %v335 = vrot.slane %v330, %v334
        %v353 = vunpack.c.l.b16 %v314
        %v354 = vunpack.c.l.b16 %v315
        %v355 = vunpack.c.l.b16 %v316
        %v356 = vunpack.c.l.b16 %v317
        %v357 = vunpack.c.l.b16 %v318
        %v358 = vunpack.c.l.b16 %v319
        %v359 = vunpack.c.l.b16 %v320
        %v360 = vunpack.c.l.b16 %v321
        %v361 = vunpack.c.l.b16 %v322
        %v362 = vunpack.c.l.b16 %v323
        %v363 = vunpack.c.l.b16 %v324
        %v364 = vunpack.c.l.b16 %v325
        %v365 = vunpack.c.l.b16 %v326
        %v366 = vunpack.c.l.b16 %v327
        %v367 = vunpack.c.l.b16 %v328
        %v368 = vunpack.c.l.b16 %v329
        %v369 = vpack.c.b16 %v354, %v353
        %v370 = vpack.c.b16 %v356, %v355
        %v371 = vpack.c.b16 %v358, %v357
        %v372 = vpack.c.b16 %v360, %v359
        %v373 = vpack.c.b16 %v362, %v361
        %v374 = vpack.c.b16 %v364, %v363
        %v375 = vpack.c.b16 %v366, %v365
        %v376 = vpack.c.b16 %v368, %v367
        %385 = vmatprep.subr.bf16.mxu0 0
        %386 = vmatpush1.bf16.msra.mxu0 %v369
        %387 = vmatprep.subr.bf16.mxu0 0
        %388 = vmatpush1.bf16.msra.mxu0 %v370
        %389 = vmatprep.subr.bf16.mxu0 0
        %390 = vmatpush1.bf16.msra.mxu0 %v371
        %391 = vmatprep.subr.bf16.mxu0 0
        %392 = vmatpush1.bf16.msra.mxu0 %v372
        %393 = vmatprep.subr.bf16.mxu0 0
        %394 = vmatpush1.bf16.msra.mxu0 %v373
        %395 = vmatprep.subr.bf16.mxu0 0
        %396 = vmatpush1.bf16.msra.mxu0 %v374
        %397 = vmatprep.subr.bf16.mxu0 0
        %398 = vmatpush1.bf16.msra.mxu0 %v375
        %399 = vmatprep.subr.bf16.mxu0 0
        %400 = vmatpush1.bf16.msra.mxu0 %v376
        %401 = vmatprep.subr.bf16.mxu0 0
        %402 = vmatpush1.bf16.msra.mxu0 0
        %403 = vmatprep.subr.bf16.mxu0 0
        %404 = vmatpush1.bf16.msra.mxu0 0
        %405 = vmatprep.subr.bf16.mxu0 0
        %406 = vmatpush1.bf16.msra.mxu0 0
        %407 = vmatprep.subr.bf16.mxu0 0
        %408 = vmatpush1.bf16.msra.mxu0 0
        %409 = vmatprep.subr.bf16.mxu0 0
        %410 = vmatpush1.bf16.msra.mxu0 0
        %411 = vmatprep.subr.bf16.mxu0 0
        %412 = vmatpush1.bf16.msra.mxu0 0
        %413 = vmatprep.subr.bf16.mxu0 0
        %414 = vmatpush1.bf16.msra.mxu0 0
        %415 = vmatprep.subr.bf16.mxu0 0
        %416 = vmatpush1.bf16.msra.mxu0 0
        %417 = vmatprep.mubr.bf16.mxu0 0
        %418 = vmatmul.mubr.bf16.gmra.mrb[0].mxu0 %v313
        %v419 = vpop.f32.mrb[0].mxu0
        %v420 = vadd.f32 %v335, %v419
        %v421 = vpop.f32.mrb[0].mxu0
        %v422 = vpop.f32.mrb[0].mxu0
        %v423 = vpop.f32.mrb[0].mxu0
        %424 = vdwg.mxu0
        %v425 = vadd.f32 %v284, %v420
        %426 = vst [vmem:[%s282] sm:$0xff] %v425
        %s427 = sand.u32 %s164, 1
        %s428 = scalar_lea.sflag [#allocation5], %s427
        %s429 = sand.u32 %s164, 1
        %s430 = smul.addr %s429, 8
        %s431 = scalar_lea.vmem [#allocation8], %s430
        // Predicated region
        $region53: #{tpu_custom_call.1} parent=43 // pred_check
          %p432 = pneg %p174
        $region54: #{tpu_custom_call.1} parent=43 // pred_check_branch
          %434 = sbr.rel (%p432) target = $region56
        $region55: #{tpu_custom_call.1} parent=43 // pred_region
          %s436 = ssub.s32 128, 128
          %437 = vsyncadd %s428, %s436
          %s438 = smul.addr %s25, 128
          %s439 = scalar_lea.hbm %s6, %s438
          %s441 = sshll.u32 %s431, 4
          %s442 = int_to_ptr.vmem [resolvable:$true] %s441
          %444 = dma.vmem_to_hbm [thread:$0]  %s442, 128, %s439, %s428
        $region56: #{tpu_custom_call.1} parent=43 // pred_fallthru
          _
      $region44: #{tpu_custom_call.1} parent=5 // pred_fallthru
        _
      %p445 = scmp.le.s32.totalorder 2, %s20
      // Predicated region
      $region57: #{tpu_custom_call.1} parent=5 // pred_check
        %p446 = pneg %p445
      $region58: #{tpu_custom_call.1} parent=5 // pred_check_branch
        %448 = sbr.rel (%p446) target = $region60
      $region59: #{tpu_custom_call.1} parent=5 // pred_region
        %s449 = ssub.s32 %s20, 2
        // Predicated region
        $region61: #{tpu_custom_call.1} parent=59 // pred_check
          %p450 = pneg %p180
        $region62: #{tpu_custom_call.1} parent=59 // pred_check_branch
          %452 = sbr.rel (%p450) target = $region64
        $region63: #{tpu_custom_call.1} parent=59 // pred_region
          %s453 = sand.u32 %s165, 1
          %s454 = scalar_lea.sflag [#allocation5], %s453
          %s455 = sand.u32 %s165, 1
          %s456 = smul.addr %s455, 8
          %s457 = scalar_lea.vmem [#allocation8], %s456
          %458 = dma.done %s454, 128
        $region64: #{tpu_custom_call.1} parent=59 // pred_fallthru
          _
      $region60: #{tpu_custom_call.1} parent=5 // pred_fallthru
        _
    $region6: #{tpu_custom_call.1} parent=1 // loop_footer
      %s24 = sadd.s32 1, %s20
    $region7: #{tpu_custom_call.1} parent=1 // loop_footer_branch
      %19 = sbr.rel target = $region3
    $region8: #{tpu_custom_call.1} parent=1 // loop_exit
      _
    %459 = vsyncpa [#allocation4], 1
    %s460 = scalar_lea.sflag [#allocation4], 1
    %461 = vsyncpa %s460, 1
    %462 = vsyncpa [#allocation7], 1
    %463 = vsyncpa [#allocation5], 1
    %s464 = scalar_lea.sflag [#allocation5], 1
    %465 = vsyncpa %s464, 1

</llo_original>
